<compile_context>
chip_gen: v5e
topology: v5e:2x2
jax: 0.10.0
libtpu: 0.0.40
codegen_flags: <defaults>
</compile_context>

<pallas_src>
import jax
import jax.numpy as jnp
from jax.experimental import pallas as pl
from jax.experimental.pallas import tpu as pltpu


def _round_up(n, m):
    return ((n + m - 1) // m) * m


def _single_layer_kernel(x_ref, w_ref, b_ref, o_ref):
    # x_ref: (TILE_B, D) VMEM (streamed per grid step)
    # w_ref: (1, D)      VMEM (grid-invariant, resident)
    # b_ref: (1, 1)      SMEM scalar
    # o_ref: (1, TILE_B) VMEM (lane-dense output row, full-width stores)
    x = x_ref[...]
    w = w_ref[...]
    # (1, D) . (TILE_B, D)^T -> (1, TILE_B): lane-dense result, no transpose.
    z = jax.lax.dot_general(
        w, x, (((1,), (1,)), ((), ())),
        precision=jax.lax.Precision.HIGHEST,
        preferred_element_type=jnp.float32)
    z = z + b_ref[0, 0]
    o_ref[...] = jax.nn.sigmoid(z).astype(o_ref.dtype)


def _vmem_budget_bytes():
    """Per-generation budget for the double-buffered x tile."""
    try:
        kind = jax.devices()[0].device_kind.lower()
    except Exception:  # pragma: no cover - defensive
        kind = ""
    if "v4" in kind or "v5" in kind:
        # v5e scoped-VMEM default is 16 MiB; 2-4 MiB tiles already saturate its
        # ~0.82 TB/s HBM, so a 12 MiB double-buffer budget is plenty.
        return 12 * 1024 * 1024
    # v6e / v7x: keep 2x(lane-padded x tile) + outputs + weight well under the
    # 32 MiB scoped default (v7x physical VMEM is only 64 MiB per TC).
    return 20 * 1024 * 1024


def _choose_tile_b(batch, d, itemsize, budget_bytes):
    """Largest batch tile whose *double-buffered, lane-padded* x block fits."""
    d_lanes = _round_up(d, 128)                      # VMEM lane padding of D
    bytes_per_row = d_lanes * itemsize
    max_rows = budget_bytes // max(1, 2 * bytes_per_row)   # double buffer
    # Multiple of 128 rows -> lane-dense (1, TILE_B) output stores.
    tile = max(128, (max_rows // 128) * 128)
    if batch <= tile:
        # Single tile: round the batch up only to sublane granularity (8).
        return max(8, _round_up(batch, 8))
    return tile


def single_layer_forward(x, w_row, b):
    """x: (B, D); w_row: (1, D); b: (1, 1)  ->  (B, 1) = sigmoid(x @ w.T + b)."""
    B, D = x.shape
    assert w_row.shape == (1, D)
    assert b.shape == (1, 1)

    budget = _vmem_budget_bytes()
    tile_b = _choose_tile_b(B, D, x.dtype.itemsize, budget)

    # Pad only to sublane granularity (at most 7 rows) -- never to tile_b.
    b_pad8 = _round_up(B, 8)
    if b_pad8 != B:
        x = jnp.pad(x, ((0, b_pad8 - B), (0, 0)))

    num_tiles = -(-b_pad8 // tile_b)          # ceil-div; ragged last x tile OK
    b_out = num_tiles * tile_b                # full-width, unmasked out stores

    itemsize = x.dtype.itemsize
    out_row = pl.pallas_call(
        _single_layer_kernel,
        out_shape=jax.ShapeDtypeStruct((1, b_out), x.dtype),
        grid=(num_tiles,),
        in_specs=[
            pl.BlockSpec((tile_b, D), lambda i: (i, 0)),          # x: streamed
            pl.BlockSpec((1, D), lambda i: (0, 0)),               # w: resident
            pl.BlockSpec(memory_space=pltpu.MemorySpace.SMEM),    # b: SMEM
        ],
        out_specs=pl.BlockSpec((1, tile_b), lambda i: (0, i)),    # lane-dense
        compiler_params=pltpu.CompilerParams(
            dimension_semantics=("parallel",),
            vmem_limit_bytes=32 * 1024 * 1024),
        cost_estimate=pl.CostEstimate(
            flops=2 * B * D,
            transcendentals=B,
            bytes_accessed=B * D * itemsize + D * itemsize + 4 + B * itemsize),
    )(x, w_row, b)

    # Columns >= B correspond to undefined padded rows; sliced off here and
    # never consumed.
    return out_row[0, :B].reshape(B, 1)


def reference_forward(x, w_row, b):
    return jax.nn.sigmoid(x @ w_row.T + b[0, 0])


if __name__ == "__main__":
    key = jax.random.PRNGKey(0)
    kx, kw, kb = jax.random.split(key, 3)

    B, in_val = 8, 32  # small shapes consistent with the module

    x = jax.random.normal(kx, (B, in_val), dtype=jnp.float32)

    # Deterministic init mimicking nn.Linear's uniform(-1/sqrt(D), 1/sqrt(D)).
    bound = 1.0 / jnp.sqrt(jnp.float32(in_val))
    w_row = jax.random.uniform(kw, (1, in_val), dtype=jnp.float32,
                               minval=-bound, maxval=bound)
    bias = jax.random.uniform(kb, (1, 1), dtype=jnp.float32,
                              minval=-bound, maxval=bound)

    out = single_layer_forward(x, w_row, bias)
    out = jax.block_until_ready(out)
    ref = reference_forward(x, w_row, bias)
    assert out.shape == (B, 1), out.shape
    assert jnp.allclose(out, ref, atol=1e-5, rtol=1e-5), \
        float(jnp.max(jnp.abs(out - ref)))

    # Also exercise the non-multiple-of-8 batch path (pad-to-8 + slice).
    B2 = 30
    x2 = jax.random.normal(kx, (B2, in_val), dtype=jnp.float32)
    out2 = jax.block_until_ready(single_layer_forward(x2, w_row, bias))
    ref2 = reference_forward(x2, w_row, bias)
    assert out2.shape == (B2, 1), out2.shape
    assert jnp.allclose(out2, ref2, atol=1e-5, rtol=1e-5), \
        float(jnp.max(jnp.abs(out2 - ref2)))

    print("KERNEL_OK")
</pallas_src>

<mosaic_0001>
module attributes {stable_mosaic.version = 11 : i64} {
  func.func @_single_layer_kernel(%arg0: i32, %arg1: memref<8x32xf32, #tpu.memory_space<vmem>>, %arg2: memref<1x32xf32, #tpu.memory_space<vmem>>, %arg3: memref<1x1xf32, #tpu.memory_space<smem>>, %arg4: memref<1x8xf32, #tpu.memory_space<vmem>>) attributes {dimension_semantics = [#tpu.dimension_semantics<parallel>], iteration_bounds = array<i64: 1>, scalar_prefetch = 0 : i64, scratch_operands = 0 : i64, tpu.core_type = #tpu.core_type<tc>, window_params = [{transform_indices = @transform_0, window_bounds = array<i64: 8, 32>}, {pipeline_mode = #tpu.pipeline_mode<synchronous>, transform_indices = @transform_1, window_bounds = array<i64: 1, 32>}, {transform_indices = @transform_2, window_bounds = array<i64: 1, 1>}, {transform_indices = @transform_3, window_bounds = array<i64: 1, 8>}]} {
    %c0 = arith.constant 0 : index
    %c0_0 = arith.constant 0 : index
    %0 = vector.load %arg1[%c0, %c0_0] : memref<8x32xf32, #tpu.memory_space<vmem>>, vector<8x32xf32>
    %c0_1 = arith.constant 0 : index
    %c0_2 = arith.constant 0 : index
    %1 = vector.load %arg2[%c0_1, %c0_2] : memref<1x32xf32, #tpu.memory_space<vmem>>, vector<1x32xf32>
    %cst = arith.constant dense<0.000000e+00> : vector<1x8xf32>
    %2 = tpu.matmul %1, %0, %cst {dimension_numbers = #tpu.dot_dimension_numbers<[1], [1], [0], [0], [0, 0, 1, 0], [], []>, precision = #tpu.contract_precision<fp32>} : vector<1x32xf32>, vector<8x32xf32>, vector<1x8xf32> -> vector<1x8xf32>
    %c0_3 = arith.constant 0 : index
    %c0_4 = arith.constant 0 : index
    %3 = memref.load %arg3[%c0_3, %c0_4] : memref<1x1xf32, #tpu.memory_space<smem>>
    %4 = vector.broadcast %3 : f32 to vector<1x8xf32>
    %5 = arith.addf %2, %4 : vector<1x8xf32>
    %6 = arith.negf %5 : vector<1x8xf32>
    %7 = math.exp %6 : vector<1x8xf32>
    %cst_5 = arith.constant 1.000000e+00 : f32
    %8 = vector.broadcast %cst_5 : f32 to vector<1x8xf32>
    %9 = arith.addf %8, %7 : vector<1x8xf32>
    %10 = arith.divf %8, %9 : vector<1x8xf32>
    %c0_6 = arith.constant 0 : index
    %c0_7 = arith.constant 0 : index
    %11 = vector.load %arg4[%c0_6, %c0_7] : memref<1x8xf32, #tpu.memory_space<vmem>>, vector<1x8xf32>
    tpu.vector_store %arg4[%c0_6, %c0_7], %10 {strides = array<i32>} : memref<1x8xf32, #tpu.memory_space<vmem>>, vector<1x8xf32>,
    return
  }
  func.func @transform_0(%arg0: i32) -> (i32, i32) {
    %c0_i32 = arith.constant 0 : i32
    %c0_i32_0 = arith.constant 0 : i32
    return %arg0, %c0_i32 : i32, i32
  }
  func.func @transform_1(%arg0: i32) -> (i32, i32) {
    %c0_i32 = arith.constant 0 : i32
    %c0_i32_0 = arith.constant 0 : i32
    %c0_i32_1 = arith.constant 0 : i32
    return %c0_i32, %c0_i32_0 : i32, i32
  }
  func.func @transform_2(%arg0: i32) -> (i32, i32) {
    %c0_i32 = arith.constant 0 : i32
    %c0_i32_0 = arith.constant 0 : i32
    %c0_i32_1 = arith.constant 0 : i32
    return %c0_i32, %c0_i32_0 : i32, i32
  }
  func.func @transform_3(%arg0: i32) -> (i32, i32) {
    %c0_i32 = arith.constant 0 : i32
    %c0_i32_0 = arith.constant 0 : i32
    return %c0_i32, %arg0 : i32, i32
  }
}

</mosaic_0001>

<llo_original>
// kernel: tpu_custom_call.1
$region0: #{tpu_custom_call.1}
  #allocation0 [shape = 'u32[]', space=smem, size = 0x4, offset = 0x4, fixed_abs, tag = 'smem constant byte address 0x4 - core index']
  #allocation1 [shape = 'u32[72,128]{1,0:T(1,128)}', space=vmem, size = 0x9000, scoped, tag = 'internal scratch']
  #allocation2 [shape = 'f32[1,1]{1,0:T(1,128)S(6)}', space=smem, size = 0x200, scoped, tag = 'scoped memory for tpu_custom_call.1']
  %s0 = inlined_call_operand.hbm [shape: f32[8,32], index: 0, kind: input, shape index: {}]
  %s1 = inlined_call_operand.vmem [shape: f32[1,32], index: 1, kind: input, shape index: {}]
  %s2 = inlined_call_operand.<no memory space> [shape: f32[1,1], index: 2, kind: input, shape index: {}]
  %s3 = inlined_call_operand.hbm [shape: f32[1,8], index: 3, kind: output, shape index: {}]
  %s4 = sld [smem:[#allocation0]]
  $region26: #{tpu_custom_call.1} parent=0
    _
  %s6 = ssub.s32 1, %s4
  %s7 = scalar_select 0, %s6, %s4
  %8 = sst [smem:[#allocation2]] %s2
  $region1: #{tpu_custom_call.1} parent=0
    #allocation3 [shape = 'u8[4096]{0}', space=vmem, size = 0x1000, scoped, tag = 'input window, operand 0, single buffered']
    #allocation4 [shape = 's32[1]{0}', space=sflag, size = 0x4, scoped, tag = 'scoped memory for tpu_custom_call.1']
    #allocation5 [shape = 's32[1]{0}', space=sflag, size = 0x4, scoped, tag = 'scoped memory for tpu_custom_call.1']
    #allocation6 [shape = 'u8[512]{0}', space=vmem, size = 0x400, scoped, tag = 'output window, operand 0, single buffered']
    %9 = vsyncpa [#allocation4], 0
    %10 = vsyncpa [#allocation5], 0
    // Predicated region
    $region2: #{tpu_custom_call.1} parent=1 // pred_check
      _
    $region3: #{tpu_custom_call.1} parent=1 // pred_check_branch
      %12 = sbr.rel (0) target = $region5
    $region4: #{tpu_custom_call.1} parent=1 // pred_region
      %14 = vsyncadd [#allocation4], 0
      %s16 = sshll.u32 %s0, 4
      %s17 = int_to_ptr.hbm [resolvable:$true] %s16
      %s18 = sshll.u32 [#allocation3], 4
      %s19 = int_to_ptr.vmem [resolvable:$true] %s18
      %21 = dma.hbm_to_vmem [thread:$0]  %s17, 128, %s19, [#allocation4]
    $region5: #{tpu_custom_call.1} parent=1 // pred_fallthru
      _
    // Predicated region
    $region6: #{tpu_custom_call.1} parent=1 // pred_check
      _
    $region7: #{tpu_custom_call.1} parent=1 // pred_check_branch
      %23 = sbr.rel (0) target = $region9
    $region8: #{tpu_custom_call.1} parent=1 // pred_region
      _
    $region9: #{tpu_custom_call.1} parent=1 // pred_fallthru
      _
    // Predicated region
    $region10: #{tpu_custom_call.1} parent=1 // pred_check
      _
    $region11: #{tpu_custom_call.1} parent=1 // pred_check_branch
      %25 = sbr.rel (0) target = $region13
    $region12: #{tpu_custom_call.1} parent=1 // pred_region
      _
    $region13: #{tpu_custom_call.1} parent=1 // pred_fallthru
      _
    // Predicated region
    $region14: #{tpu_custom_call.1} parent=1 // pred_check
      _
    $region15: #{tpu_custom_call.1} parent=1 // pred_check_branch
      %27 = sbr.rel (0) target = $region17
    $region16: #{tpu_custom_call.1} parent=1 // pred_region
      %29 = dma.done [#allocation4], 128
    $region17: #{tpu_custom_call.1} parent=1 // pred_fallthru
      _
    %v30 = vld [vmem:[#allocation3] sm:$0xff]
    %v31 = vld [vmem:[%s1] sm:$0x1]
    %s32 = sld [smem:[#allocation2]]
    %v33 = vstv %s32
    %vm34 = vcmask 261120
    %v36 = vsel %vm34, %v31, 0
    %v39 = vsel %vm34, %v30, 0
    %41 = vmatpush.xpose.msra.mxu0 0.0
    %42 = vmatpush.xpose.msra.mxu0 0.0
    %43 = vmatpush.xpose.msra.mxu0 0.0
    %44 = vmatpush.xpose.msra.mxu0 0.0
    %45 = vmatpush.xpose.msra.mxu0 0.0
    %46 = vmatpush.xpose.msra.mxu0 0.0
    %47 = vmatpush.xpose.msra.mxu0 0.0
    %48 = vmatpush.xpose.msra.mxu0 0.0
    %49 = vmatpush.xpose.msra.mxu0 0.0
    %50 = vmatpush.xpose.msra.mxu0 0.0
    %51 = vmatpush.xpose.msra.mxu0 0.0
    %52 = vmatpush.xpose.msra.mxu0 0.0
    %53 = vmatpush.xpose.msra.mxu0 0.0
    %54 = vmatpush.xpose.msra.mxu0 0.0
    %55 = vmatpush.xpose.msra.mxu0 0.0
    %v56 = vand.u32 %v39, 4294901760
    %57 = vmatpush.xpose.msra.mxu0 %v56
    %v58 = vand.u32 %v36, 4294901760
    %v59 = vsub.f32 %v36, %v58
    %v60 = vand.u32 %v59, 4294901760
    %v61 = vsub.f32 %v59, %v60
    %v62 = vand.u32 %v61, 4294901760
    %63 = vmatmul.f32.gmra.mxu0 %v62
    %v64 = vpop.f32.mrf.mxu0
    %v65 = vadd.f32 %v33, %v64
    %66 = vdwg.mxu0
    %67 = vmatpush.xpose.msra.mxu0 0.0
    %68 = vmatpush.xpose.msra.mxu0 0.0
    %69 = vmatpush.xpose.msra.mxu0 0.0
    %70 = vmatpush.xpose.msra.mxu0 0.0
    %71 = vmatpush.xpose.msra.mxu0 0.0
    %72 = vmatpush.xpose.msra.mxu0 0.0
    %73 = vmatpush.xpose.msra.mxu0 0.0
    %74 = vmatpush.xpose.msra.mxu0 0.0
    %75 = vmatpush.xpose.msra.mxu0 0.0
    %76 = vmatpush.xpose.msra.mxu0 0.0
    %77 = vmatpush.xpose.msra.mxu0 0.0
    %78 = vmatpush.xpose.msra.mxu0 0.0
    %79 = vmatpush.xpose.msra.mxu0 0.0
    %80 = vmatpush.xpose.msra.mxu0 0.0
    %81 = vmatpush.xpose.msra.mxu0 0.0
    %v82 = vand.u32 %v39, 4294901760
    %v83 = vsub.f32 %v39, %v82
    %v84 = vand.u32 %v83, 4294901760
    %v85 = vsub.f32 %v83, %v84
    %v86 = vand.u32 %v85, 4294901760
    %87 = vmatpush.xpose.msra.mxu0 %v86
    %v88 = vand.u32 %v36, 4294901760
    %89 = vmatmul.f32.gmra.mxu0 %v88
    %v90 = vpop.f32.mrf.mxu0
    %v91 = vadd.f32 %v65, %v90
    %92 = vdwg.mxu0
    %93 = vmatpush.xpose.msra.mxu0 0.0
    %94 = vmatpush.xpose.msra.mxu0 0.0
    %95 = vmatpush.xpose.msra.mxu0 0.0
    %96 = vmatpush.xpose.msra.mxu0 0.0
    %97 = vmatpush.xpose.msra.mxu0 0.0
    %98 = vmatpush.xpose.msra.mxu0 0.0
    %99 = vmatpush.xpose.msra.mxu0 0.0
    %100 = vmatpush.xpose.msra.mxu0 0.0
    %101 = vmatpush.xpose.msra.mxu0 0.0
    %102 = vmatpush.xpose.msra.mxu0 0.0
    %103 = vmatpush.xpose.msra.mxu0 0.0
    %104 = vmatpush.xpose.msra.mxu0 0.0
    %105 = vmatpush.xpose.msra.mxu0 0.0
    %106 = vmatpush.xpose.msra.mxu0 0.0
    %107 = vmatpush.xpose.msra.mxu0 0.0
    %v108 = vand.u32 %v39, 4294901760
    %v109 = vsub.f32 %v39, %v108
    %110 = vmatpush.xpose.msra.mxu0 %v109
    %v111 = vand.u32 %v36, 4294901760
    %v112 = vsub.f32 %v36, %v111
    %113 = vmatmul.f32.gmra.mxu0 %v112
    %v114 = vpop.f32.mrf.mxu0
    %v115 = vadd.f32 %v91, %v114
    %116 = vdwg.mxu0
    %117 = vmatpush.xpose.msra.mxu0 0.0
    %118 = vmatpush.xpose.msra.mxu0 0.0
    %119 = vmatpush.xpose.msra.mxu0 0.0
    %120 = vmatpush.xpose.msra.mxu0 0.0
    %121 = vmatpush.xpose.msra.mxu0 0.0
    %122 = vmatpush.xpose.msra.mxu0 0.0
    %123 = vmatpush.xpose.msra.mxu0 0.0
    %124 = vmatpush.xpose.msra.mxu0 0.0
    %125 = vmatpush.xpose.msra.mxu0 0.0
    %126 = vmatpush.xpose.msra.mxu0 0.0
    %127 = vmatpush.xpose.msra.mxu0 0.0
    %128 = vmatpush.xpose.msra.mxu0 0.0
    %129 = vmatpush.xpose.msra.mxu0 0.0
    %130 = vmatpush.xpose.msra.mxu0 0.0
    %131 = vmatpush.xpose.msra.mxu0 0.0
    %v132 = vand.u32 %v39, 4294901760
    %133 = vmatpush.xpose.msra.mxu0 %v132
    %v134 = vand.u32 %v36, 4294901760
    %v135 = vsub.f32 %v36, %v134
    %v136 = vand.u32 %v135, 4294901760
    %137 = vmatmul.f32.gmra.mxu0 %v136
    %v138 = vpop.f32.mrf.mxu0
    %v139 = vadd.f32 %v115, %v138
    %140 = vdwg.mxu0
    %141 = vmatpush.xpose.msra.mxu0 0.0
    %142 = vmatpush.xpose.msra.mxu0 0.0
    %143 = vmatpush.xpose.msra.mxu0 0.0
    %144 = vmatpush.xpose.msra.mxu0 0.0
    %145 = vmatpush.xpose.msra.mxu0 0.0
    %146 = vmatpush.xpose.msra.mxu0 0.0
    %147 = vmatpush.xpose.msra.mxu0 0.0
    %148 = vmatpush.xpose.msra.mxu0 0.0
    %149 = vmatpush.xpose.msra.mxu0 0.0
    %150 = vmatpush.xpose.msra.mxu0 0.0
    %151 = vmatpush.xpose.msra.mxu0 0.0
    %152 = vmatpush.xpose.msra.mxu0 0.0
    %153 = vmatpush.xpose.msra.mxu0 0.0
    %154 = vmatpush.xpose.msra.mxu0 0.0
    %155 = vmatpush.xpose.msra.mxu0 0.0
    %v156 = vand.u32 %v39, 4294901760
    %v157 = vsub.f32 %v39, %v156
    %v158 = vand.u32 %v157, 4294901760
    %159 = vmatpush.xpose.msra.mxu0 %v158
    %v160 = vand.u32 %v36, 4294901760
    %161 = vmatmul.f32.gmra.mxu0 %v160
    %v162 = vpop.f32.mrf.mxu0
    %v163 = vadd.f32 %v139, %v162
    %164 = vdwg.mxu0
    %165 = vmatpush.xpose.msra.mxu0 0.0
    %166 = vmatpush.xpose.msra.mxu0 0.0
    %167 = vmatpush.xpose.msra.mxu0 0.0
    %168 = vmatpush.xpose.msra.mxu0 0.0
    %169 = vmatpush.xpose.msra.mxu0 0.0
    %170 = vmatpush.xpose.msra.mxu0 0.0
    %171 = vmatpush.xpose.msra.mxu0 0.0
    %172 = vmatpush.xpose.msra.mxu0 0.0
    %173 = vmatpush.xpose.msra.mxu0 0.0
    %174 = vmatpush.xpose.msra.mxu0 0.0
    %175 = vmatpush.xpose.msra.mxu0 0.0
    %176 = vmatpush.xpose.msra.mxu0 0.0
    %177 = vmatpush.xpose.msra.mxu0 0.0
    %178 = vmatpush.xpose.msra.mxu0 0.0
    %179 = vmatpush.xpose.msra.mxu0 0.0
    %v180 = vand.u32 %v39, 4294901760
    %181 = vmatpush.xpose.msra.mxu0 %v180
    %v182 = vand.u32 %v36, 4294901760
    %183 = vmatmul.f32.gmra.mxu0 %v182
    %v184 = vpop.f32.mrf.mxu0
    %v185 = vadd.f32 %v163, %v184
    %186 = vdwg.mxu0
    %v187 = vxor.u32 %v185, 2147483648
    %v188 = vmul.f32 %v187, 1.442695
    %v189 = vpow.pop %v188
    %v190 = vadd.f32 %v189, 1.0
    %v191 = vrcp.pop %v190
    %v192 = vmul.f32 %v190, %v191
    %v193 = vsub.f32 1.0, %v192
    %v194 = vmul.f32 %v191, %v193
    %v195 = vadd.f32 %v191, %v194
    %vm196 = vweird.f32 %v190
    %vm197 = vweird.f32 %v191
    %vm198 = vmor %vm196, %vm197
    %v199 = vsel %vm198, %v191, %v195
    %v200 = vand.u32 2147483647, %v190
    %vm201 = vcmp.eq.f32.partialorder %v200, 8.507059e+37
    %v202 = vand.u32 %v190, 2147483648
    %v203 = vor.u32 1.1754944e-38, %v202
    %v204 = vsel %vm201, %v203, %v199
    %v205 = vmul.f32 1.0, %v204
    %vm206 = vcmask 57344
    %207 = vst.msk [vmem:[#allocation6] sm:$0x1] %vm206, %v205
    // Predicated region
    $region18: #{tpu_custom_call.1} parent=1 // pred_check
      _
    $region19: #{tpu_custom_call.1} parent=1 // pred_check_branch
      %209 = sbr.rel (0) target = $region21
    $region20: #{tpu_custom_call.1} parent=1 // pred_region
      %211 = vsyncadd [#allocation5], 0
      %s213 = sshll.u32 [#allocation6], 4
      %s214 = int_to_ptr.vmem [resolvable:$true] %s213
      %s215 = sshll.u32 %s3, 4
      %s216 = int_to_ptr.hbm [resolvable:$true] %s215
      %218 = dma.vmem_to_hbm [thread:$0]  %s214, 16, %s216, [#allocation5]
    $region21: #{tpu_custom_call.1} parent=1 // pred_fallthru
      _
    // Predicated region
    $region22: #{tpu_custom_call.1} parent=1 // pred_check
      _
    $region23: #{tpu_custom_call.1} parent=1 // pred_check_branch
      %220 = sbr.rel (0) target = $region25
    $region24: #{tpu_custom_call.1} parent=1 // pred_region
      %222 = dma.done [#allocation5], 16
    $region25: #{tpu_custom_call.1} parent=1 // pred_fallthru
      _
    %223 = vsyncpa [#allocation4], 1
    %224 = vsyncpa [#allocation5], 1

</llo_original>
